<compile_context>
chip_gen: v7x
topology: tpu7x:2x2x1
jax: 0.10.0
libtpu: 0.0.40
codegen_flags: <defaults>
</compile_context>

<pallas_src>
import jax
import jax.numpy as jnp
from jax import lax
from jax.experimental import pallas as pl
from jax.experimental.pallas import tpu as pltpu


def _fused_mlp_kernel(p_ref, w1_ref, b1_ref, w2_ref, b2_ref, o_ref):
    # p_ref : (TM, 9*Cin)       bf16 im2col patches (rows = n*H*W + h*W + w)
    # w1_ref: (9*Cin, Cmid_p)   bf16 (Cmid zero-padded to a 128 multiple)
    # b1_ref: (1, Cmid_p)       f32  (zeros in the padded columns)
    # w2_ref: (Cmid_p, K2p)     bf16 (zero rows for Cmid pad, zero cols for K2 pad)
    # b2_ref: (1, K2p)          f32
    # o_ref : (TM, K2p)         bf16 -- lane-dense store
    y = jnp.dot(p_ref[...], w1_ref[...], preferred_element_type=jnp.float32)
    y = jnp.maximum(y + b1_ref[...], 0.0)                       # ConvRelu (f32 VPU)
    z = jnp.dot(y.astype(w2_ref.dtype), w2_ref[...],
                preferred_element_type=jnp.float32)
    z = jnp.maximum(z + b2_ref[...], 0.0)                       # deconv + ReLU
    o_ref[...] = z.astype(o_ref.dtype)


def _round_up(x, m):
    return ((x + m - 1) // m) * m


def decoder_block_v4(x_nchw, w1_t, b1_t, w2_t, b2_t):
    """Forward pass of DecoderBlockV4 (is_deconv=True).

    x_nchw: (N, Cin, H, W)
    w1_t  : (Cmid, Cin, 3, 3)   Conv2d.weight          b1_t: (Cmid,)
    w2_t  : (Cmid, Cout, 3, 3)  ConvTranspose2d.weight b2_t: (Cout,)
    Returns (N, Cout, 4H, 4W) float32.
    """
    N, Cin, H, W = x_nchw.shape
    Cmid = w1_t.shape[0]
    Cout = w2_t.shape[1]

    # One-tap transposed-conv trick is only valid for stride >= kernel, pad=0.
    STRIDE, KSIZE = 4, 3
    assert STRIDE >= KSIZE, "one-tap deconv formulation requires stride >= kernel"

    K1 = 9 * Cin
    K2 = 9 * Cout
    Cmid_p = _round_up(Cmid, 128)     # lane-dense intermediate
    K2p = _round_up(K2, 128)          # lane-dense output store

    # ---- im2col slab built directly in bf16 (single wrapper pass) ---------
    x_nhwc = jnp.transpose(x_nchw, (0, 2, 3, 1)).astype(jnp.bfloat16)
    xpad = jnp.pad(x_nhwc, ((0, 0), (1, 1), (1, 1), (0, 0)))
    patches = jnp.stack(
        [xpad[:, dy:dy + H, dx:dx + W, :] for dy in range(3) for dx in range(3)],
        axis=3).reshape(N * H * W, K1)                      # (M, 9*Cin) bf16

    # ---- flattened / zero-padded weights (weight-side only; numerics kept:
    #      relu(0 + 0) = 0 in the padded Cmid columns, zero rows of w2 add 0) -
    w1p = jnp.zeros((K1, Cmid_p), jnp.bfloat16).at[:, :Cmid].set(
        w1_t.transpose(2, 3, 1, 0).reshape(K1, Cmid).astype(jnp.bfloat16))
    b1p = jnp.zeros((1, Cmid_p), jnp.float32).at[:, :Cmid].set(
        b1_t.astype(jnp.float32)[None, :])
    w2p = jnp.zeros((Cmid_p, K2p), jnp.bfloat16).at[:Cmid, :K2].set(
        w2_t.transpose(0, 2, 3, 1).reshape(Cmid, K2).astype(jnp.bfloat16))
    b2p = jnp.zeros((1, K2p), jnp.float32).at[:, :K2].set(
        jnp.tile(b2_t.astype(jnp.float32), 9)[None, :])

    # ---- row tiling: VMEM-budgeted TM, multiple of 256, >=2 grid steps ----
    M = N * H * W
    weights_bytes = 2 * (K1 * Cmid_p * 2 + Cmid_p * K2p * 2       # bf16, dbl-buf
                         + Cmid_p * 4 + K2p * 4)                  # f32 biases
    per_row_bytes = (2 * K1 * 2        # bf16 input block, double-buffered
                     + 2 * K2p * 2     # bf16 output block, double-buffered
                     + Cmid_p * 4      # f32 intermediate y
                     + K2p * 4)        # f32 z before the bf16 cast
    budget = 32 * 2**20                # conservative vs v7x's 64 MiB physical VMEM
    avail = max(budget - weights_bytes, 4 * 2**20)
    tm_cap = max(256, min(8192, (avail // per_row_bytes) // 256 * 256))
    # Target ~2+ grid steps so both v7x TensorCores get work (no-op on v5e/v6e).
    TM = min(tm_cap, _round_up(max(1, (M + 1) // 2), 256))
    M_pad = _round_up(M, TM)
    if M_pad != M:
        # Padded rows produce relu(relu(b1) @ w2 + b2) garbage; they are
        # sliced off below with out[:M] -- do not remove that slice.
        patches = jnp.pad(patches, ((0, M_pad - M), (0, 0)))

    out = pl.pallas_call(
        _fused_mlp_kernel,
        out_shape=jax.ShapeDtypeStruct((M_pad, K2p), jnp.bfloat16),
        grid=(M_pad // TM,),
        in_specs=[
            pl.BlockSpec((TM, K1), lambda i: (i, 0)),
            pl.BlockSpec((K1, Cmid_p), lambda i: (0, 0)),
            pl.BlockSpec((1, Cmid_p), lambda i: (0, 0)),
            pl.BlockSpec((Cmid_p, K2p), lambda i: (0, 0)),
            pl.BlockSpec((1, K2p), lambda i: (0, 0)),
        ],
        out_specs=pl.BlockSpec((TM, K2p), lambda i: (i, 0)),
        compiler_params=pltpu.CompilerParams(
            dimension_semantics=("parallel",),
            vmem_limit_bytes=48 * 2**20),
    )(patches, w1p, b1p, w2p, b2p)

    # ---- glue: scatter the 3x3 phases into the stride-4 grid --------------
    # Output pixels with row%4==3 or col%4==3 (incl. the output_padding
    # row/col) receive no deconv tap -> they are relu(bias) only.
    z = out[:M, :K2].reshape(N, H, W, 3, 3, Cout)
    zr = z.transpose(0, 1, 3, 2, 4, 5)                    # (N, H, kh, W, kw, Cout)
    relu_b2 = jnp.maximum(b2_t, 0.0).astype(out.dtype)    # (Cout,)
    full = jnp.full((N, H, 4, W, 4, Cout), relu_b2, out.dtype)
    full = full.at[:, :, :3, :, :3, :].set(zr)            # single scatter pass
    out_nhwc = full.reshape(N, 4 * H, 4 * W, Cout)
    # NCHW to match the PyTorch module (cast fused with the transpose).
    return out_nhwc.transpose(0, 3, 1, 2).astype(jnp.float32)


def reference(x_nchw, w1_t, b1_t, w2_t, b2_t):
    """Pure-JAX (lax.conv) reference with PyTorch-layout weights."""
    y = lax.conv_general_dilated(
        x_nchw, w1_t, window_strides=(1, 1), padding=((1, 1), (1, 1)),
        dimension_numbers=("NCHW", "OIHW", "NCHW"),
        precision=lax.Precision.HIGHEST)
    y = jnp.maximum(y + b1_t[None, :, None, None], 0.0)
    # ConvTranspose2d(stride=4, pad=0, output_padding=1) as a dilated conv
    # with the spatially flipped / channel-swapped kernel.
    w2_f = jnp.flip(w2_t, axis=(2, 3)).transpose(1, 0, 2, 3)  # (Cout, Cmid, 3, 3)
    z = lax.conv_general_dilated(
        y, w2_f, window_strides=(1, 1), padding=((2, 3), (2, 3)),
        lhs_dilation=(4, 4),
        dimension_numbers=("NCHW", "OIHW", "NCHW"),
        precision=lax.Precision.HIGHEST)
    return jnp.maximum(z + b2_t[None, :, None, None], 0.0)


if __name__ == "__main__":
    N, Cin, H, W = 2, 4, 16, 16
    Cmid, Cout = 8, 4

    key = jax.random.PRNGKey(0)
    kx, k1, k2, k3, k4 = jax.random.split(key, 5)
    x = jax.random.normal(kx, (N, Cin, H, W), jnp.float32)

    # Deterministic synthetic parameters (PyTorch layouts):
    w1_t = 0.1 * jax.random.normal(k1, (Cmid, Cin, 3, 3), jnp.float32)   # Conv2d.weight
    b1_t = 0.1 * jax.random.normal(k2, (Cmid,), jnp.float32)             # Conv2d.bias
    w2_t = 0.1 * jax.random.normal(k3, (Cmid, Cout, 3, 3), jnp.float32)  # ConvTranspose2d.weight
    b2_t = 0.1 * jax.random.normal(k4, (Cout,), jnp.float32)             # ConvTranspose2d.bias

    out = jax.block_until_ready(decoder_block_v4(x, w1_t, b1_t, w2_t, b2_t))
    assert out.shape == (N, Cout, 4 * H, 4 * W), out.shape

    ref = jax.block_until_ready(reference(x, w1_t, b1_t, w2_t, b2_t))
    abs_err = jnp.abs(out - ref)
    rel_err = abs_err / (jnp.abs(ref) + 1e-3)
    max_abs = float(jnp.max(abs_err))
    max_rel = float(jnp.max(jnp.minimum(abs_err / 5e-2, rel_err / 2e-2)))
    assert max_abs < 5e-2 or max_rel < 1.0, (
        f"error too large: max_abs={max_abs}, mixed={max_rel}")

    print("KERNEL_OK")
</pallas_src>

<mosaic_0001>
module attributes {stable_mosaic.version = 11 : i64} {
  func.func @_fused_mlp_kernel(%arg0: i32, %arg1: memref<256x36xbf16, #tpu.memory_space<vmem>>, %arg2: memref<36x128xbf16, #tpu.memory_space<vmem>>, %arg3: memref<1x128xf32, #tpu.memory_space<vmem>>, %arg4: memref<128x128xbf16, #tpu.memory_space<vmem>>, %arg5: memref<1x128xf32, #tpu.memory_space<vmem>>, %arg6: memref<256x128xbf16, #tpu.memory_space<vmem>>) attributes {dimension_semantics = [#tpu.dimension_semantics<parallel>], iteration_bounds = array<i64: 2>, scalar_prefetch = 0 : i64, scratch_operands = 0 : i64, tpu.core_type = #tpu.core_type<tc>, window_params = [{transform_indices = @transform_0, window_bounds = array<i64: 256, 36>}, {pipeline_mode = #tpu.pipeline_mode<synchronous>, transform_indices = @transform_1, window_bounds = array<i64: 36, 128>}, {pipeline_mode = #tpu.pipeline_mode<synchronous>, transform_indices = @transform_2, window_bounds = array<i64: 1, 128>}, {pipeline_mode = #tpu.pipeline_mode<synchronous>, transform_indices = @transform_3, window_bounds = array<i64: 128, 128>}, {pipeline_mode = #tpu.pipeline_mode<synchronous>, transform_indices = @transform_4, window_bounds = array<i64: 1, 128>}, {transform_indices = @transform_5, window_bounds = array<i64: 256, 128>}]} {
    %c0 = arith.constant 0 : index
    %c0_0 = arith.constant 0 : index
    %0 = vector.load %arg1[%c0, %c0_0] : memref<256x36xbf16, #tpu.memory_space<vmem>>, vector<256x36xbf16>
    %c0_1 = arith.constant 0 : index
    %c0_2 = arith.constant 0 : index
    %1 = vector.load %arg2[%c0_1, %c0_2] : memref<36x128xbf16, #tpu.memory_space<vmem>>, vector<36x128xbf16>
    %cst = arith.constant dense<0.000000e+00> : vector<256x128xf32>
    %2 = tpu.matmul %0, %1, %cst {dimension_numbers = #tpu.dot_dimension_numbers<[1], [0], [0], [1], [0, 0, 1, 1], [], []>} : vector<256x36xbf16>, vector<36x128xbf16>, vector<256x128xf32> -> vector<256x128xf32>
    %c0_3 = arith.constant 0 : index
    %c0_4 = arith.constant 0 : index
    %3 = vector.load %arg3[%c0_3, %c0_4] : memref<1x128xf32, #tpu.memory_space<vmem>>, vector<1x128xf32>
    %4 = vector.broadcast %3 : vector<1x128xf32> to vector<256x128xf32>
    %5 = arith.addf %2, %4 : vector<256x128xf32>
    %cst_5 = arith.constant 0.000000e+00 : f32
    %6 = vector.broadcast %cst_5 : f32 to vector<256x128xf32>
    %7 = arith.maximumf %5, %6 : vector<256x128xf32>
    %8 = arith.truncf %7 : vector<256x128xf32> to vector<256x128xbf16>
    %c0_6 = arith.constant 0 : index
    %c0_7 = arith.constant 0 : index
    %9 = vector.load %arg4[%c0_6, %c0_7] : memref<128x128xbf16, #tpu.memory_space<vmem>>, vector<128x128xbf16>
    %cst_8 = arith.constant dense<0.000000e+00> : vector<256x128xf32>
    %10 = tpu.matmul %8, %9, %cst_8 {dimension_numbers = #tpu.dot_dimension_numbers<[1], [0], [0], [1], [0, 0, 1, 1], [], []>} : vector<256x128xbf16>, vector<128x128xbf16>, vector<256x128xf32> -> vector<256x128xf32>
    %c0_9 = arith.constant 0 : index
    %c0_10 = arith.constant 0 : index
    %11 = vector.load %arg5[%c0_9, %c0_10] : memref<1x128xf32, #tpu.memory_space<vmem>>, vector<1x128xf32>
    %12 = vector.broadcast %11 : vector<1x128xf32> to vector<256x128xf32>
    %13 = arith.addf %10, %12 : vector<256x128xf32>
    %cst_11 = arith.constant 0.000000e+00 : f32
    %14 = vector.broadcast %cst_11 : f32 to vector<256x128xf32>
    %15 = arith.maximumf %13, %14 : vector<256x128xf32>
    %16 = arith.truncf %15 : vector<256x128xf32> to vector<256x128xbf16>
    %c0_12 = arith.constant 0 : index
    %c0_13 = arith.constant 0 : index
    %17 = vector.load %arg6[%c0_12, %c0_13] : memref<256x128xbf16, #tpu.memory_space<vmem>>, vector<256x128xbf16>
    tpu.vector_store %arg6[%c0_12, %c0_13], %16 {strides = array<i32>} : memref<256x128xbf16, #tpu.memory_space<vmem>>, vector<256x128xbf16>,
    return
  }
  func.func @transform_0(%arg0: i32) -> (i32, i32) {
    %c0_i32 = arith.constant 0 : i32
    %c0_i32_0 = arith.constant 0 : i32
    return %arg0, %c0_i32 : i32, i32
  }
  func.func @transform_1(%arg0: i32) -> (i32, i32) {
    %c0_i32 = arith.constant 0 : i32
    %c0_i32_0 = arith.constant 0 : i32
    %c0_i32_1 = arith.constant 0 : i32
    return %c0_i32, %c0_i32_0 : i32, i32
  }
  func.func @transform_2(%arg0: i32) -> (i32, i32) {
    %c0_i32 = arith.constant 0 : i32
    %c0_i32_0 = arith.constant 0 : i32
    %c0_i32_1 = arith.constant 0 : i32
    return %c0_i32, %c0_i32_0 : i32, i32
  }
  func.func @transform_3(%arg0: i32) -> (i32, i32) {
    %c0_i32 = arith.constant 0 : i32
    %c0_i32_0 = arith.constant 0 : i32
    %c0_i32_1 = arith.constant 0 : i32
    return %c0_i32, %c0_i32_0 : i32, i32
  }
  func.func @transform_4(%arg0: i32) -> (i32, i32) {
    %c0_i32 = arith.constant 0 : i32
    %c0_i32_0 = arith.constant 0 : i32
    %c0_i32_1 = arith.constant 0 : i32
    return %c0_i32, %c0_i32_0 : i32, i32
  }
  func.func @transform_5(%arg0: i32) -> (i32, i32) {
    %c0_i32 = arith.constant 0 : i32
    %c0_i32_0 = arith.constant 0 : i32
    return %arg0, %c0_i32 : i32, i32
  }
}

</mosaic_0001>

<llo_original>
// kernel: tpu_custom_call.1
$region0: #{tpu_custom_call.1}
  #allocation0 [shape = 'u32[]', space=smem, size = 0x4, offset = 0x4, fixed_abs, tag = 'smem constant byte address 0x4 - core index']
  #allocation1 [shape = 'u32[144,128]{1,0:T(1,128)}', space=vmem, size = 0x12000, scoped, tag = 'internal scratch']
  %s0 = inlined_call_operand.vmem [shape: bf16[512,36], index: 0, kind: input, shape index: {}]
  %s1 = inlined_call_operand.vmem [shape: bf16[36,128], index: 1, kind: input, shape index: {}]
  %s2 = inlined_call_operand.vmem [shape: f32[1,128], index: 2, kind: input, shape index: {}]
  %s3 = inlined_call_operand.vmem [shape: bf16[128,128], index: 3, kind: input, shape index: {}]
  %s4 = inlined_call_operand.vmem [shape: f32[1,128], index: 4, kind: input, shape index: {}]
  %s5 = inlined_call_operand.hbm [shape: bf16[512,128], index: 5, kind: output, shape index: {}]
  %s6 = sld [smem:[#allocation0]]
  $region53: #{tpu_custom_call.1} parent=0
    _
  %s8 = ssub.s32 1, %s6
  %s9 = scalar_select 0, %s8, %s6
  $region1: #{tpu_custom_call.1} parent=0
    #allocation2 [shape = 'u8[131072]{0}', space=vmem, size = 0x20000, scoped, tag = 'output window, operand 0']
    #allocation3 [shape = 's32[2]{0}', space=sflag, size = 0x8, scoped, tag = 'scoped memory for tpu_custom_call.1']
    %10 = vsyncpa [#allocation3], 0
    %s11 = scalar_lea.sflag [#allocation3], 1
    %12 = vsyncpa %s11, 0
    loop: start=0, step=1, limit=4
    $region2: #{tpu_custom_call.1} parent=1 // loop_pre_header
      _
    $region3: #{tpu_custom_call.1} parent=1 // loop_header
      %s14 = sphi 0, %s18
      %p15 = scmp.ge.s32.totalorder %s14, 4
      %s24 = sphi 0, %s26
      %s27 = sphi 0, %s24
      %s28 = sphi 0, %s27
      %s44 = sphi 0, %s28
      %s48 = sphi 0, %s48
      %s50 = sphi 0, %s48
      %s51 = sphi 0, %s50
      %s65 = sphi 0, %s51
      %s69 = sphi 0, %s69
      %s71 = sphi 0, %s69
      %s72 = sphi 0, %s71
      %s86 = sphi 0, %s72
      %s90 = sphi 0, %s90
      %s92 = sphi 0, %s90
      %s93 = sphi 0, %s92
      %s107 = sphi 0, %s93
      %s111 = sphi 0, %s111
      %s113 = sphi 0, %s111
      %s114 = sphi 0, %s113
      %s128 = sphi 0, %s114
      %s134 = sphi 0, %s136
      %s137 = sphi 0, %s134
      %s138 = sphi 0, %s137
      %s154 = sphi 0, %s138
    $region4: #{tpu_custom_call.1} parent=1 // loop_header_branch
      %17 = sbr.rel (%p15) target = $region8
    $region5: #{tpu_custom_call.1} parent=1 // loop_body
      %s19 = ssub.s32 %s14, 1
      %s20 = ssub.s32 %s14, 2
      %s21 = sadd.s32 %s14, 1
      %s22 = ssub.s32 %s14, %s21
      %p23 = scmp.eq.s32.totalorder %s22, 0
      %s25 = sadd.s32 %s24, 1
      %s26 = scalar_select %p23, %s24, %s25
      %p29 = pneg %p23
      %p30 = scmp.eq.s32.totalorder %s14, 1
      %p31 = por %p29, %p30
      %p32 = scmp.ne.s32.totalorder %s24, %s27
      %p33 = scmp.eq.s32.totalorder %s14, 0
      %p34 = por %p32, %p33
      %p35 = scmp.ne.s32.totalorder %s24, %s27
      %p36 = scmp.eq.s32.totalorder %s19, 1
      %p37 = por %p35, %p36
      %p38 = scmp.ne.s32.totalorder %s27, %s28
      %p39 = scmp.eq.s32.totalorder %s19, 0
      %p40 = por %p38, %p39
      %p41 = scmp.ne.s32.totalorder %s27, %s28
      %p42 = scmp.eq.s32.totalorder %s20, 1
      %p43 = por %p41, %p42
      %p45 = scmp.ne.s32.totalorder %s28, %s44
      %p46 = scmp.eq.s32.totalorder %s20, 0
      %p47 = por %p45, %p46
      %s49 = sadd.s32 %s48, 1
      %p52 = scmp.eq.s32.totalorder %s14, 1
      %p53 = scmp.ne.s32.totalorder %s48, %s50
      %p54 = scmp.eq.s32.totalorder %s14, 0
      %p55 = por %p53, %p54
      %p56 = scmp.ne.s32.totalorder %s48, %s50
      %p57 = scmp.eq.s32.totalorder %s19, 1
      %p58 = por %p56, %p57
      %p59 = scmp.ne.s32.totalorder %s50, %s51
      %p60 = scmp.eq.s32.totalorder %s19, 0
      %p61 = por %p59, %p60
      %p62 = scmp.ne.s32.totalorder %s50, %s51
      %p63 = scmp.eq.s32.totalorder %s20, 1
      %p64 = por %p62, %p63
      %p66 = scmp.ne.s32.totalorder %s51, %s65
      %p67 = scmp.eq.s32.totalorder %s20, 0
      %p68 = por %p66, %p67
      %s70 = sadd.s32 %s69, 1
      %p73 = scmp.eq.s32.totalorder %s14, 1
      %p74 = scmp.ne.s32.totalorder %s69, %s71
      %p75 = scmp.eq.s32.totalorder %s14, 0
      %p76 = por %p74, %p75
      %p77 = scmp.ne.s32.totalorder %s69, %s71
      %p78 = scmp.eq.s32.totalorder %s19, 1
      %p79 = por %p77, %p78
      %p80 = scmp.ne.s32.totalorder %s71, %s72
      %p81 = scmp.eq.s32.totalorder %s19, 0
      %p82 = por %p80, %p81
      %p83 = scmp.ne.s32.totalorder %s71, %s72
      %p84 = scmp.eq.s32.totalorder %s20, 1
      %p85 = por %p83, %p84
      %p87 = scmp.ne.s32.totalorder %s72, %s86
      %p88 = scmp.eq.s32.totalorder %s20, 0
      %p89 = por %p87, %p88
      %s91 = sadd.s32 %s90, 1
      %p94 = scmp.eq.s32.totalorder %s14, 1
      %p95 = scmp.ne.s32.totalorder %s90, %s92
      %p96 = scmp.eq.s32.totalorder %s14, 0
      %p97 = por %p95, %p96
      %p98 = scmp.ne.s32.totalorder %s90, %s92
      %p99 = scmp.eq.s32.totalorder %s19, 1
      %p100 = por %p98, %p99
      %p101 = scmp.ne.s32.totalorder %s92, %s93
      %p102 = scmp.eq.s32.totalorder %s19, 0
      %p103 = por %p101, %p102
      %p104 = scmp.ne.s32.totalorder %s92, %s93
      %p105 = scmp.eq.s32.totalorder %s20, 1
      %p106 = por %p104, %p105
      %p108 = scmp.ne.s32.totalorder %s93, %s107
      %p109 = scmp.eq.s32.totalorder %s20, 0
      %p110 = por %p108, %p109
      %s112 = sadd.s32 %s111, 1
      %p115 = scmp.eq.s32.totalorder %s14, 1
      %p116 = scmp.ne.s32.totalorder %s111, %s113
      %p117 = scmp.eq.s32.totalorder %s14, 0
      %p118 = por %p116, %p117
      %p119 = scmp.ne.s32.totalorder %s111, %s113
      %p120 = scmp.eq.s32.totalorder %s19, 1
      %p121 = por %p119, %p120
      %p122 = scmp.ne.s32.totalorder %s113, %s114
      %p123 = scmp.eq.s32.totalorder %s19, 0
      %p124 = por %p122, %p123
      %p125 = scmp.ne.s32.totalorder %s113, %s114
      %p126 = scmp.eq.s32.totalorder %s20, 1
      %p127 = por %p125, %p126
      %p129 = scmp.ne.s32.totalorder %s114, %s128
      %p130 = scmp.eq.s32.totalorder %s20, 0
      %p131 = por %p129, %p130
      %s132 = ssub.s32 %s14, %s21
      %p133 = scmp.eq.s32.totalorder %s132, 0
      %s135 = sadd.s32 %s134, 1
      %s136 = scalar_select %p133, %s134, %s135
      %p139 = pneg %p133
      %p140 = scmp.eq.s32.totalorder %s14, 1
      %p141 = por %p139, %p140
      %p142 = scmp.ne.s32.totalorder %s134, %s137
      %p143 = scmp.eq.s32.totalorder %s14, 0
      %p144 = por %p142, %p143
      %p145 = scmp.ne.s32.totalorder %s134, %s137
      %p146 = scmp.eq.s32.totalorder %s19, 1
      %p147 = por %p145, %p146
      %p148 = scmp.ne.s32.totalorder %s137, %s138
      %p149 = scmp.eq.s32.totalorder %s19, 0
      %p150 = por %p148, %p149
      %p151 = scmp.ne.s32.totalorder %s137, %s138
      %p152 = scmp.eq.s32.totalorder %s20, 1
      %p153 = por %p151, %p152
      %p155 = scmp.ne.s32.totalorder %s138, %s154
      %p156 = scmp.eq.s32.totalorder %s20, 0
      %p157 = por %p155, %p156
      %p158 = scmp.le.s32.totalorder 1, %s14
      %p159 = scmp.lt.s32.totalorder %s14, 3
      %p160 = pnand %p158, %p159
      %p161 = pneg %p160
      // Predicated region
      $region9: #{tpu_custom_call.1} parent=5 // pred_check
        _
      $region10: #{tpu_custom_call.1} parent=5 // pred_check_branch
        %163 = sbr.rel (%p160) target = $region12
      $region11: #{tpu_custom_call.1} parent=5 // pred_region
        %s164 = ssub.s32 %s14, 1
        // Predicated region
        $region13: #{tpu_custom_call.1} parent=11 // pred_check
          %p165 = pneg %p61
        $region14: #{tpu_custom_call.1} parent=11 // pred_check_branch
          %167 = sbr.rel (%p165) target = $region16
        $region15: #{tpu_custom_call.1} parent=11 // pred_region
          _
        $region16: #{tpu_custom_call.1} parent=11 // pred_fallthru
          _
        // Predicated region
        $region17: #{tpu_custom_call.1} parent=11 // pred_check
          %p168 = pneg %p82
        $region18: #{tpu_custom_call.1} parent=11 // pred_check_branch
          %170 = sbr.rel (%p168) target = $region20
        $region19: #{tpu_custom_call.1} parent=11 // pred_region
          _
        $region20: #{tpu_custom_call.1} parent=11 // pred_fallthru
          _
        // Predicated region
        $region21: #{tpu_custom_call.1} parent=11 // pred_check
          %p171 = pneg %p103
        $region22: #{tpu_custom_call.1} parent=11 // pred_check_branch
          %173 = sbr.rel (%p171) target = $region24
        $region23: #{tpu_custom_call.1} parent=11 // pred_region
          _
        $region24: #{tpu_custom_call.1} parent=11 // pred_fallthru
          _
        // Predicated region
        $region25: #{tpu_custom_call.1} parent=11 // pred_check
          %p174 = pneg %p124
        $region26: #{tpu_custom_call.1} parent=11 // pred_check_branch
          %176 = sbr.rel (%p174) target = $region28
        $region27: #{tpu_custom_call.1} parent=11 // pred_region
          _
        $region28: #{tpu_custom_call.1} parent=11 // pred_fallthru
          _
      $region12: #{tpu_custom_call.1} parent=5 // pred_fallthru
        _
      %p177 = scmp.lt.s32.totalorder %s14, 2
      // Predicated region
      $region29: #{tpu_custom_call.1} parent=5 // pred_check
        %p178 = pneg %p177
      $region30: #{tpu_custom_call.1} parent=5 // pred_check_branch
        %180 = sbr.rel (%p178) target = $region32
      $region31: #{tpu_custom_call.1} parent=5 // pred_region
        // Predicated region
        $region33: #{tpu_custom_call.1} parent=31 // pred_check
          %p181 = pneg %p34
        $region34: #{tpu_custom_call.1} parent=31 // pred_check_branch
          %183 = sbr.rel (%p181) target = $region36
        $region35: #{tpu_custom_call.1} parent=31 // pred_region
          %s184 = smul.u32 32, %s14
          %p185 = scmp.lt.s32.totalorder %s184, 63
          %s186 = scalar_select %p185, %s184, 63
          %s187 = smul.addr %s186, 4
          %s188 = scalar_lea.vmem %s0, %s187
          %s189 = smul.u32 32, %s14
        $region36: #{tpu_custom_call.1} parent=31 // pred_fallthru
          _
      $region32: #{tpu_custom_call.1} parent=5 // pred_fallthru
        _
      %p190 = scmp.le.s32.totalorder 1, %s14
      %p191 = scmp.lt.s32.totalorder %s14, 3
      %p192 = pnand %p190, %p191
      %p193 = pneg %p192
      // Predicated region
      $region37: #{tpu_custom_call.1} parent=5 // pred_check
        _
      $region38: #{tpu_custom_call.1} parent=5 // pred_check_branch
        %195 = sbr.rel (%p192) target = $region40
      $region39: #{tpu_custom_call.1} parent=5 // pred_region
        %s196 = ssub.s32 %s14, 1
        %s197 = smul.u32 32, %s19
        %p198 = scmp.lt.s32.totalorder %s197, 63
        %s199 = scalar_select %p198, %s197, 63
        %s200 = smul.addr %s199, 4
        %s201 = scalar_lea.vmem %s0, %s200
        %p202 = pneg %p40
        %p203 = pneg %p37
        %p204 = pneg %p61
        %p205 = pneg %p58
        %p206 = pneg %p82
        %p207 = pneg %p79
        %p208 = pneg %p103
        %p209 = pneg %p100
        %p210 = pneg %p124
        %p211 = pneg %p121
        %p212 = pneg %p150
        %p213 = pneg %p147
        %s214 = sand.u32 %s137, 1
        %s215 = scalar_lea.sflag [#allocation3], %s214
        %s216 = sand.u32 %s137, 1
        %s217 = smul.addr %s216, 128
        %s218 = scalar_lea.vmem [#allocation2], %s217
        %s219 = smul.u32 32, %s19
        %p220 = scmp.lt.s32.totalorder %s219, 63
        %s221 = scalar_select %p220, %s219, 63
        %s222 = smul.addr %s221, 4
        %s223 = scalar_lea.vmem %s0, %s222
        %s224 = smul.u32 32, %s19
        %s225 = smul.u32 32, %s19
        %v227 = vld [vmem:[%s223] sm:$0xf]
        %v228 = vld [vmem:[%s223 + $0x4] sm:$0xf]
        %v229 = vld [vmem:[%s223 + $0x8] sm:$0xf]
        %v230 = vld [vmem:[%s223 + $0xc] sm:$0xf]
        %v231 = vld [vmem:[%s223 + $0x10] sm:$0xf]
        %v232 = vld [vmem:[%s223 + $0x14] sm:$0xf]
        %v233 = vld [vmem:[%s223 + $0x18] sm:$0xf]
        %v234 = vld [vmem:[%s223 + $0x1c] sm:$0xf]
        %v235 = vld [vmem:[%s223 + $0x20] sm:$0xf]
        %v236 = vld [vmem:[%s223 + $0x24] sm:$0xf]
        %v237 = vld [vmem:[%s223 + $0x28] sm:$0xf]
        %v238 = vld [vmem:[%s223 + $0x2c] sm:$0xf]
        %v239 = vld [vmem:[%s223 + $0x30] sm:$0xf]
        %v240 = vld [vmem:[%s223 + $0x34] sm:$0xf]
        %v241 = vld [vmem:[%s223 + $0x38] sm:$0xf]
        %v242 = vld [vmem:[%s223 + $0x3c] sm:$0xf]
        %v243 = vld [vmem:[%s223 + $0x40] sm:$0xf]
        %v244 = vld [vmem:[%s223 + $0x44] sm:$0xf]
        %v245 = vld [vmem:[%s223 + $0x48] sm:$0xf]
        %v246 = vld [vmem:[%s223 + $0x4c] sm:$0xf]
        %v247 = vld [vmem:[%s223 + $0x50] sm:$0xf]
        %v248 = vld [vmem:[%s223 + $0x54] sm:$0xf]
        %v249 = vld [vmem:[%s223 + $0x58] sm:$0xf]
        %v250 = vld [vmem:[%s223 + $0x5c] sm:$0xf]
        %v251 = vld [vmem:[%s223 + $0x60] sm:$0xf]
        %v252 = vld [vmem:[%s223 + $0x64] sm:$0xf]
        %v253 = vld [vmem:[%s223 + $0x68] sm:$0xf]
        %v254 = vld [vmem:[%s223 + $0x6c] sm:$0xf]
        %v255 = vld [vmem:[%s223 + $0x70] sm:$0xf]
        %v256 = vld [vmem:[%s223 + $0x74] sm:$0xf]
        %v257 = vld [vmem:[%s223 + $0x78] sm:$0xf]
        %v258 = vld [vmem:[%s223 + $0x7c] sm:$0xf]
        %v259 = vld [vmem:[%s1] sm:$0xf]
        %v260 = vld [vmem:[%s1 + $0x4] sm:$0xf]
        %v261 = vld [vmem:[%s1 + $0x8] sm:$0xf]
        %v262 = vld [vmem:[%s1 + $0xc] sm:$0xf]
        %v263 = vld [vmem:[%s1 + $0x10] sm:$0x3]
        %v264 = vld [vmem:[%s2] sm:$0x1]
        %v266 = vlaneseq
        %v267 = vshrl.u32 %v266, 7
        %v268 = vsub.s32 0, %v267
        %v269 = vrot.slane %v264, %v268
        %v303 = vunpack.c.l.b16 %v227
        %v304 = vunpack.c.l.b16 %v228
        %v305 = vunpack.c.l.b16 %v229
        %v306 = vunpack.c.l.b16 %v230
        %v307 = vunpack.c.l.b16 %v231
        %v308 = vunpack.c.l.b16 %v232
        %v309 = vunpack.c.l.b16 %v233
        %v310 = vunpack.c.l.b16 %v234
        %v311 = vunpack.c.l.b16 %v235
        %v312 = vunpack.c.l.b16 %v236
        %v313 = vunpack.c.l.b16 %v237
        %v314 = vunpack.c.l.b16 %v238
        %v315 = vunpack.c.l.b16 %v239
        %v316 = vunpack.c.l.b16 %v240
        %v317 = vunpack.c.l.b16 %v241
        %v318 = vunpack.c.l.b16 %v242
        %v319 = vunpack.c.l.b16 %v243
        %v320 = vunpack.c.l.b16 %v244
        %v321 = vunpack.c.l.b16 %v245
        %v322 = vunpack.c.l.b16 %v246
        %v323 = vunpack.c.l.b16 %v247
        %v324 = vunpack.c.l.b16 %v248
        %v325 = vunpack.c.l.b16 %v249
        %v326 = vunpack.c.l.b16 %v250
        %v327 = vunpack.c.l.b16 %v251
        %v328 = vunpack.c.l.b16 %v252
        %v329 = vunpack.c.l.b16 %v253
        %v330 = vunpack.c.l.b16 %v254
        %v331 = vunpack.c.l.b16 %v255
        %v332 = vunpack.c.l.b16 %v256
        %v333 = vunpack.c.l.b16 %v257
        %v334 = vunpack.c.l.b16 %v258
        %v335 = vpack.c.b16 %v304, %v303
        %v336 = vpack.c.b16 %v306, %v305
        %v337 = vpack.c.b16 %v308, %v307
        %v338 = vpack.c.b16 %v310, %v309
        %v339 = vpack.c.b16 %v312, %v311
        %v340 = vpack.c.b16 %v314, %v313
        %v341 = vpack.c.b16 %v316, %v315
        %v342 = vpack.c.b16 %v318, %v317
        %v343 = vpack.c.b16 %v320, %v319
        %v344 = vpack.c.b16 %v322, %v321
        %v345 = vpack.c.b16 %v324, %v323
        %v346 = vpack.c.b16 %v326, %v325
        %v347 = vpack.c.b16 %v328, %v327
        %v348 = vpack.c.b16 %v330, %v329
        %v349 = vpack.c.b16 %v332, %v331
        %v350 = vpack.c.b16 %v334, %v333
        %v356 = vunpack.c.l.b16 %v259
        %v357 = vunpack.c.l.b16 %v260
        %v358 = vunpack.c.l.b16 %v261
        %v359 = vunpack.c.l.b16 %v262
        %v360 = vunpack.c.l.b16 %v263
        %v361 = vpack.c.b16 %v357, %v356
        %v362 = vpack.c.b16 %v359, %v358
        %v363 = vpack.c.b16 %v360, %v360
        %vm366 = vcmask 293888
        %v368 = vsel %vm366, %v335, 0
        %v371 = vsel %vm366, %v336, 0
        %v374 = vsel %vm366, %v337, 0
        %v377 = vsel %vm366, %v338, 0
        %v380 = vsel %vm366, %v339, 0
        %v383 = vsel %vm366, %v340, 0
        %v386 = vsel %vm366, %v341, 0
        %v389 = vsel %vm366, %v342, 0
        %v392 = vsel %vm366, %v343, 0
        %v395 = vsel %vm366, %v344, 0
        %v398 = vsel %vm366, %v345, 0
        %v401 = vsel %vm366, %v346, 0
        %v404 = vsel %vm366, %v347, 0
        %v407 = vsel %vm366, %v348, 0
        %v410 = vsel %vm366, %v349, 0
        %v413 = vsel %vm366, %v350, 0
        %vm415 = vcmask 1041408
        %v417 = vsel %vm415, %v363, 0
        %419 = vmatprep.subr.bf16.mxu0 0
        %420 = vmatpush1.bf16.msra.mxu0 %v361
        %421 = vmatprep.subr.bf16.mxu0 0
        %422 = vmatpush1.bf16.msra.mxu0 %v362
        %423 = vmatprep.subr.bf16.mxu0 0
        %424 = vmatpush1.bf16.msra.mxu0 %v417
        %425 = vmatprep.subr.bf16.mxu0 0
        %426 = vmatpush1.bf16.msra.mxu0 0
        %427 = vmatprep.subr.bf16.mxu0 0
        %428 = vmatpush1.bf16.msra.mxu0 0
        %429 = vmatprep.subr.bf16.mxu0 0
        %430 = vmatpush1.bf16.msra.mxu0 0
        %431 = vmatprep.subr.bf16.mxu0 0
        %432 = vmatpush1.bf16.msra.mxu0 0
        %433 = vmatprep.subr.bf16.mxu0 0
        %434 = vmatpush1.bf16.msra.mxu0 0
        %435 = vmatprep.subr.bf16.mxu0 0
        %436 = vmatpush1.bf16.msra.mxu0 0
        %437 = vmatprep.subr.bf16.mxu0 0
        %438 = vmatpush1.bf16.msra.mxu0 0
        %439 = vmatprep.subr.bf16.mxu0 0
        %440 = vmatpush1.bf16.msra.mxu0 0
        %441 = vmatprep.subr.bf16.mxu0 0
        %442 = vmatpush1.bf16.msra.mxu0 0
        %443 = vmatprep.subr.bf16.mxu0 0
        %444 = vmatpush1.bf16.msra.mxu0 0
        %445 = vmatprep.subr.bf16.mxu0 0
        %446 = vmatpush1.bf16.msra.mxu0 0
        %447 = vmatprep.subr.bf16.mxu0 0
        %448 = vmatpush1.bf16.msra.mxu0 0
        %449 = vmatprep.subr.bf16.mxu0 0
        %450 = vmatpush1.bf16.msra.mxu0 0
        %451 = vmatprep.mubr.bf16.mxu0 0
        %452 = vmatmul.mubr.bf16.gmra.mrb[0].mxu0 %v368
        %v453 = vpop.f32.mrb[0].mxu0
        %v454 = vadd.f32 %v269, %v453
        %v455 = vpop.f32.mrb[0].mxu0
        %v456 = vpop.f32.mrb[0].mxu0
        %v457 = vadd.f32 %v269, %v456
        %v458 = vpop.f32.mrb[0].mxu0
        %459 = vmatprep.mubr.bf16.mxu0 0
        %460 = vmatmul.mubr.bf16.gmra.mrb[0].mxu0 %v371
        %v461 = vpop.f32.mrb[0].mxu0
        %v462 = vadd.f32 %v269, %v461
        %v463 = vpop.f32.mrb[0].mxu0
        %v464 = vpop.f32.mrb[0].mxu0
        %v465 = vadd.f32 %v269, %v464
        %v466 = vpop.f32.mrb[0].mxu0
        %467 = vmatprep.mubr.bf16.mxu0 0
        %468 = vmatmul.mubr.bf16.gmra.mrb[0].mxu0 %v374
        %v469 = vpop.f32.mrb[0].mxu0
        %v470 = vadd.f32 %v269, %v469
        %v471 = vpop.f32.mrb[0].mxu0
        %v472 = vpop.f32.mrb[0].mxu0
        %v473 = vadd.f32 %v269, %v472
        %v474 = vpop.f32.mrb[0].mxu0
        %475 = vmatprep.mubr.bf16.mxu0 0
        %476 = vmatmul.mubr.bf16.gmra.mrb[0].mxu0 %v377
        %v477 = vpop.f32.mrb[0].mxu0
        %v478 = vadd.f32 %v269, %v477
        %v479 = vpop.f32.mrb[0].mxu0
        %v480 = vpop.f32.mrb[0].mxu0
        %v481 = vadd.f32 %v269, %v480
        %v482 = vpop.f32.mrb[0].mxu0
        %483 = vmatprep.mubr.bf16.mxu0 0
        %484 = vmatmul.mubr.bf16.gmra.mrb[0].mxu0 %v380
        %v485 = vpop.f32.mrb[0].mxu0
        %v486 = vadd.f32 %v269, %v485
        %v487 = vpop.f32.mrb[0].mxu0
        %v488 = vpop.f32.mrb[0].mxu0
        %v489 = vadd.f32 %v269, %v488
        %v490 = vpop.f32.mrb[0].mxu0
        %491 = vmatprep.mubr.bf16.mxu0 0
        %492 = vmatmul.mubr.bf16.gmra.mrb[0].mxu0 %v383
        %v493 = vpop.f32.mrb[0].mxu0
        %v494 = vadd.f32 %v269, %v493
        %v495 = vpop.f32.mrb[0].mxu0
        %v496 = vpop.f32.mrb[0].mxu0
        %v497 = vadd.f32 %v269, %v496
        %v498 = vpop.f32.mrb[0].mxu0
        %499 = vmatprep.mubr.bf16.mxu0 0
        %500 = vmatmul.mubr.bf16.gmra.mrb[0].mxu0 %v386
        %v501 = vpop.f32.mrb[0].mxu0
        %v502 = vadd.f32 %v269, %v501
        %v503 = vpop.f32.mrb[0].mxu0
        %v504 = vpop.f32.mrb[0].mxu0
        %v505 = vadd.f32 %v269, %v504
        %v506 = vpop.f32.mrb[0].mxu0
        %507 = vmatprep.mubr.bf16.mxu0 0
        %508 = vmatmul.mubr.bf16.gmra.mrb[0].mxu0 %v389
        %v509 = vpop.f32.mrb[0].mxu0
        %v510 = vadd.f32 %v269, %v509
        %v511 = vpop.f32.mrb[0].mxu0
        %v512 = vpop.f32.mrb[0].mxu0
        %v513 = vadd.f32 %v269, %v512
        %v514 = vpop.f32.mrb[0].mxu0
        %515 = vmatprep.mubr.bf16.mxu0 0
        %516 = vmatmul.mubr.bf16.gmra.mrb[0].mxu0 %v392
        %v517 = vpop.f32.mrb[0].mxu0
        %v518 = vadd.f32 %v269, %v517
        %v519 = vpop.f32.mrb[0].mxu0
        %v520 = vpop.f32.mrb[0].mxu0
        %v521 = vadd.f32 %v269, %v520
        %v522 = vpop.f32.mrb[0].mxu0
        %523 = vmatprep.mubr.bf16.mxu0 0
        %524 = vmatmul.mubr.bf16.gmra.mrb[0].mxu0 %v395
        %v525 = vpop.f32.mrb[0].mxu0
        %v526 = vadd.f32 %v269, %v525
        %v527 = vpop.f32.mrb[0].mxu0
        %v528 = vpop.f32.mrb[0].mxu0
        %v529 = vadd.f32 %v269, %v528
        %v530 = vpop.f32.mrb[0].mxu0
        %531 = vmatprep.mubr.bf16.mxu0 0
        %532 = vmatmul.mubr.bf16.gmra.mrb[0].mxu0 %v398
        %v533 = vpop.f32.mrb[0].mxu0
        %v534 = vadd.f32 %v269, %v533
        %v535 = vpop.f32.mrb[0].mxu0
        %v536 = vpop.f32.mrb[0].mxu0
        %v537 = vadd.f32 %v269, %v536
        %v538 = vpop.f32.mrb[0].mxu0
        %539 = vmatprep.mubr.bf16.mxu0 0
        %540 = vmatmul.mubr.bf16.gmra.mrb[0].mxu0 %v401
        %v541 = vpop.f32.mrb[0].mxu0
        %v542 = vadd.f32 %v269, %v541
        %v543 = vpop.f32.mrb[0].mxu0
        %v544 = vpop.f32.mrb[0].mxu0
        %v545 = vadd.f32 %v269, %v544
        %v546 = vpop.f32.mrb[0].mxu0
        %547 = vmatprep.mubr.bf16.mxu0 0
        %548 = vmatmul.mubr.bf16.gmra.mrb[0].mxu0 %v404
        %v549 = vpop.f32.mrb[0].mxu0
        %v550 = vadd.f32 %v269, %v549
        %v551 = vpop.f32.mrb[0].mxu0
        %v552 = vpop.f32.mrb[0].mxu0
        %v553 = vadd.f32 %v269, %v552
        %v554 = vpop.f32.mrb[0].mxu0
        %555 = vmatprep.mubr.bf16.mxu0 0
        %556 = vmatmul.mubr.bf16.gmra.mrb[0].mxu0 %v407
        %v557 = vpop.f32.mrb[0].mxu0
        %v558 = vadd.f32 %v269, %v557
        %v559 = vpop.f32.mrb[0].mxu0
        %v560 = vpop.f32.mrb[0].mxu0
        %v561 = vadd.f32 %v269, %v560
        %v562 = vpop.f32.mrb[0].mxu0
        %563 = vmatprep.mubr.bf16.mxu0 0
        %564 = vmatmul.mubr.bf16.gmra.mrb[0].mxu0 %v410
        %v565 = vpop.f32.mrb[0].mxu0
        %v566 = vadd.f32 %v269, %v565
        %v567 = vpop.f32.mrb[0].mxu0
        %v568 = vpop.f32.mrb[0].mxu0
        %v569 = vadd.f32 %v269, %v568
        %v570 = vpop.f32.mrb[0].mxu0
        %571 = vmatprep.mubr.bf16.mxu0 0
        %572 = vmatmul.mubr.bf16.gmra.mrb[0].mxu0 %v413
        %v573 = vpop.f32.mrb[0].mxu0
        %v574 = vadd.f32 %v269, %v573
        %v575 = vpop.f32.mrb[0].mxu0
        %v576 = vpop.f32.mrb[0].mxu0
        %v577 = vadd.f32 %v269, %v576
        %v578 = vpop.f32.mrb[0].mxu0
        %579 = vdwg.mxu0
        %v580 = vmax.f32 %v454, 0.0
        %v581 = vmax.f32 %v457, 0.0
        %v582 = vmax.f32 %v462, 0.0
        %v583 = vmax.f32 %v465, 0.0
        %v584 = vmax.f32 %v470, 0.0
        %v585 = vmax.f32 %v473, 0.0
        %v586 = vmax.f32 %v478, 0.0
        %v587 = vmax.f32 %v481, 0.0
        %v588 = vmax.f32 %v486, 0.0
        %v589 = vmax.f32 %v489, 0.0
        %v590 = vmax.f32 %v494, 0.0
        %v591 = vmax.f32 %v497, 0.0
        %v592 = vmax.f32 %v502, 0.0
        %v593 = vmax.f32 %v505, 0.0
        %v594 = vmax.f32 %v510, 0.0
        %v595 = vmax.f32 %v513, 0.0
        %v596 = vmax.f32 %v518, 0.0
        %v597 = vmax.f32 %v521, 0.0
        %v598 = vmax.f32 %v526, 0.0
        %v599 = vmax.f32 %v529, 0.0
        %v600 = vmax.f32 %v534, 0.0
        %v601 = vmax.f32 %v537, 0.0
        %v602 = vmax.f32 %v542, 0.0
        %v603 = vmax.f32 %v545, 0.0
        %v604 = vmax.f32 %v550, 0.0
        %v605 = vmax.f32 %v553, 0.0
        %v606 = vmax.f32 %v558, 0.0
        %v607 = vmax.f32 %v561, 0.0
        %v608 = vmax.f32 %v566, 0.0
        %v609 = vmax.f32 %v569, 0.0
        %v610 = vmax.f32 %v574, 0.0
        %v611 = vmax.f32 %v577, 0.0
        %v612 = vpack.c.bf16 %v581, %v580
        %v613 = vpack.c.bf16 %v583, %v582
        %v614 = vpack.c.bf16 %v585, %v584
        %v615 = vpack.c.bf16 %v587, %v586
        %v616 = vpack.c.bf16 %v589, %v588
        %v617 = vpack.c.bf16 %v591, %v590
        %v618 = vpack.c.bf16 %v593, %v592
        %v619 = vpack.c.bf16 %v595, %v594
        %v620 = vpack.c.bf16 %v597, %v596
        %v621 = vpack.c.bf16 %v599, %v598
        %v622 = vpack.c.bf16 %v601, %v600
        %v623 = vpack.c.bf16 %v603, %v602
        %v624 = vpack.c.bf16 %v605, %v604
        %v625 = vpack.c.bf16 %v607, %v606
        %v626 = vpack.c.bf16 %v609, %v608
        %v627 = vpack.c.bf16 %v611, %v610
        %v628 = vld [vmem:[%s3] sm:$0xf]
        %v629 = vld [vmem:[%s3 + $0x4] sm:$0xf]
        %v630 = vld [vmem:[%s3 + $0x8] sm:$0xf]
        %v631 = vld [vmem:[%s3 + $0xc] sm:$0xf]
        %v632 = vld [vmem:[%s3 + $0x10] sm:$0xf]
        %v633 = vld [vmem:[%s3 + $0x14] sm:$0xf]
        %v634 = vld [vmem:[%s3 + $0x18] sm:$0xf]
        %v635 = vld [vmem:[%s3 + $0x1c] sm:$0xf]
        %v636 = vld [vmem:[%s3 + $0x20] sm:$0xf]
        %v637 = vld [vmem:[%s3 + $0x24] sm:$0xf]
        %v638 = vld [vmem:[%s3 + $0x28] sm:$0xf]
        %v639 = vld [vmem:[%s3 + $0x2c] sm:$0xf]
        %v640 = vld [vmem:[%s3 + $0x30] sm:$0xf]
        %v641 = vld [vmem:[%s3 + $0x34] sm:$0xf]
        %v642 = vld [vmem:[%s3 + $0x38] sm:$0xf]
        %v643 = vld [vmem:[%s3 + $0x3c] sm:$0xf]
        %v644 = vld [vmem:[%s4] sm:$0x1]
        %v646 = vlaneseq
        %v647 = vshrl.u32 %v646, 7
        %v648 = vsub.s32 0, %v647
        %v649 = vrot.slane %v644, %v648
        %v667 = vunpack.c.l.b16 %v628
        %v668 = vunpack.c.l.b16 %v629
        %v669 = vunpack.c.l.b16 %v630
        %v670 = vunpack.c.l.b16 %v631
        %v671 = vunpack.c.l.b16 %v632
        %v672 = vunpack.c.l.b16 %v633
        %v673 = vunpack.c.l.b16 %v634
        %v674 = vunpack.c.l.b16 %v635
        %v675 = vunpack.c.l.b16 %v636
        %v676 = vunpack.c.l.b16 %v637
        %v677 = vunpack.c.l.b16 %v638
        %v678 = vunpack.c.l.b16 %v639
        %v679 = vunpack.c.l.b16 %v640
        %v680 = vunpack.c.l.b16 %v641
        %v681 = vunpack.c.l.b16 %v642
        %v682 = vunpack.c.l.b16 %v643
        %v683 = vpack.c.b16 %v668, %v667
        %v684 = vpack.c.b16 %v670, %v669
        %v685 = vpack.c.b16 %v672, %v671
        %v686 = vpack.c.b16 %v674, %v673
        %v687 = vpack.c.b16 %v676, %v675
        %v688 = vpack.c.b16 %v678, %v677
        %v689 = vpack.c.b16 %v680, %v679
        %v690 = vpack.c.b16 %v682, %v681
        %699 = vmatprep.subr.bf16.mxu0 0
        %700 = vmatpush1.bf16.msra.mxu0 %v683
        %701 = vmatprep.subr.bf16.mxu0 0
        %702 = vmatpush1.bf16.msra.mxu0 %v684
        %703 = vmatprep.subr.bf16.mxu0 0
        %704 = vmatpush1.bf16.msra.mxu0 %v685
        %705 = vmatprep.subr.bf16.mxu0 0
        %706 = vmatpush1.bf16.msra.mxu0 %v686
        %707 = vmatprep.subr.bf16.mxu0 0
        %708 = vmatpush1.bf16.msra.mxu0 %v687
        %709 = vmatprep.subr.bf16.mxu0 0
        %710 = vmatpush1.bf16.msra.mxu0 %v688
        %711 = vmatprep.subr.bf16.mxu0 0
        %712 = vmatpush1.bf16.msra.mxu0 %v689
        %713 = vmatprep.subr.bf16.mxu0 0
        %714 = vmatpush1.bf16.msra.mxu0 %v690
        %715 = vmatprep.subr.bf16.mxu0 0
        %716 = vmatpush1.bf16.msra.mxu0 0
        %717 = vmatprep.subr.bf16.mxu0 0
        %718 = vmatpush1.bf16.msra.mxu0 0
        %719 = vmatprep.subr.bf16.mxu0 0
        %720 = vmatpush1.bf16.msra.mxu0 0
        %721 = vmatprep.subr.bf16.mxu0 0
        %722 = vmatpush1.bf16.msra.mxu0 0
        %723 = vmatprep.subr.bf16.mxu0 0
        %724 = vmatpush1.bf16.msra.mxu0 0
        %725 = vmatprep.subr.bf16.mxu0 0
        %726 = vmatpush1.bf16.msra.mxu0 0
        %727 = vmatprep.subr.bf16.mxu0 0
        %728 = vmatpush1.bf16.msra.mxu0 0
        %729 = vmatprep.subr.bf16.mxu0 0
        %730 = vmatpush1.bf16.msra.mxu0 0
        %731 = vmatprep.mubr.bf16.mxu0 0
        %732 = vmatmul.mubr.bf16.gmra.mrb[0].mxu0 %v612
        %v733 = vpop.f32.mrb[0].mxu0
        %v734 = vadd.f32 %v649, %v733
        %v735 = vpop.f32.mrb[0].mxu0
        %v736 = vpop.f32.mrb[0].mxu0
        %v737 = vadd.f32 %v649, %v736
        %v738 = vpop.f32.mrb[0].mxu0
        %739 = vmatprep.mubr.bf16.mxu0 0
        %740 = vmatmul.mubr.bf16.gmra.mrb[0].mxu0 %v613
        %v741 = vpop.f32.mrb[0].mxu0
        %v742 = vadd.f32 %v649, %v741
        %v743 = vpop.f32.mrb[0].mxu0
        %v744 = vpop.f32.mrb[0].mxu0
        %v745 = vadd.f32 %v649, %v744
        %v746 = vpop.f32.mrb[0].mxu0
        %747 = vmatprep.mubr.bf16.mxu0 0
        %748 = vmatmul.mubr.bf16.gmra.mrb[0].mxu0 %v614
        %v749 = vpop.f32.mrb[0].mxu0
        %v750 = vadd.f32 %v649, %v749
        %v751 = vpop.f32.mrb[0].mxu0
        %v752 = vpop.f32.mrb[0].mxu0
        %v753 = vadd.f32 %v649, %v752
        %v754 = vpop.f32.mrb[0].mxu0
        %755 = vmatprep.mubr.bf16.mxu0 0
        %756 = vmatmul.mubr.bf16.gmra.mrb[0].mxu0 %v615
        %v757 = vpop.f32.mrb[0].mxu0
        %v758 = vadd.f32 %v649, %v757
        %v759 = vpop.f32.mrb[0].mxu0
        %v760 = vpop.f32.mrb[0].mxu0
        %v761 = vadd.f32 %v649, %v760
        %v762 = vpop.f32.mrb[0].mxu0
        %763 = vmatprep.mubr.bf16.mxu0 0
        %764 = vmatmul.mubr.bf16.gmra.mrb[0].mxu0 %v616
        %v765 = vpop.f32.mrb[0].mxu0
        %v766 = vadd.f32 %v649, %v765
        %v767 = vpop.f32.mrb[0].mxu0
        %v768 = vpop.f32.mrb[0].mxu0
        %v769 = vadd.f32 %v649, %v768
        %v770 = vpop.f32.mrb[0].mxu0
        %771 = vmatprep.mubr.bf16.mxu0 0
        %772 = vmatmul.mubr.bf16.gmra.mrb[0].mxu0 %v617
        %v773 = vpop.f32.mrb[0].mxu0
        %v774 = vadd.f32 %v649, %v773
        %v775 = vpop.f32.mrb[0].mxu0
        %v776 = vpop.f32.mrb[0].mxu0
        %v777 = vadd.f32 %v649, %v776
        %v778 = vpop.f32.mrb[0].mxu0
        %779 = vmatprep.mubr.bf16.mxu0 0
        %780 = vmatmul.mubr.bf16.gmra.mrb[0].mxu0 %v618
        %v781 = vpop.f32.mrb[0].mxu0
        %v782 = vadd.f32 %v649, %v781
        %v783 = vpop.f32.mrb[0].mxu0
        %v784 = vpop.f32.mrb[0].mxu0
        %v785 = vadd.f32 %v649, %v784
        %v786 = vpop.f32.mrb[0].mxu0
        %787 = vmatprep.mubr.bf16.mxu0 0
        %788 = vmatmul.mubr.bf16.gmra.mrb[0].mxu0 %v619
        %v789 = vpop.f32.mrb[0].mxu0
        %v790 = vadd.f32 %v649, %v789
        %v791 = vpop.f32.mrb[0].mxu0
        %v792 = vpop.f32.mrb[0].mxu0
        %v793 = vadd.f32 %v649, %v792
        %v794 = vpop.f32.mrb[0].mxu0
        %795 = vmatprep.mubr.bf16.mxu0 0
        %796 = vmatmul.mubr.bf16.gmra.mrb[0].mxu0 %v620
        %v797 = vpop.f32.mrb[0].mxu0
        %v798 = vadd.f32 %v649, %v797
        %v799 = vpop.f32.mrb[0].mxu0
        %v800 = vpop.f32.mrb[0].mxu0
        %v801 = vadd.f32 %v649, %v800
        %v802 = vpop.f32.mrb[0].mxu0
        %803 = vmatprep.mubr.bf16.mxu0 0
        %804 = vmatmul.mubr.bf16.gmra.mrb[0].mxu0 %v621
        %v805 = vpop.f32.mrb[0].mxu0
        %v806 = vadd.f32 %v649, %v805
        %v807 = vpop.f32.mrb[0].mxu0
        %v808 = vpop.f32.mrb[0].mxu0
        %v809 = vadd.f32 %v649, %v808
        %v810 = vpop.f32.mrb[0].mxu0
        %811 = vmatprep.mubr.bf16.mxu0 0
        %812 = vmatmul.mubr.bf16.gmra.mrb[0].mxu0 %v622
        %v813 = vpop.f32.mrb[0].mxu0
        %v814 = vadd.f32 %v649, %v813
        %v815 = vpop.f32.mrb[0].mxu0
        %v816 = vpop.f32.mrb[0].mxu0
        %v817 = vadd.f32 %v649, %v816
        %v818 = vpop.f32.mrb[0].mxu0
        %819 = vmatprep.mubr.bf16.mxu0 0
        %820 = vmatmul.mubr.bf16.gmra.mrb[0].mxu0 %v623
        %v821 = vpop.f32.mrb[0].mxu0
        %v822 = vadd.f32 %v649, %v821
        %v823 = vpop.f32.mrb[0].mxu0
        %v824 = vpop.f32.mrb[0].mxu0
        %v825 = vadd.f32 %v649, %v824
        %v826 = vpop.f32.mrb[0].mxu0
        %827 = vmatprep.mubr.bf16.mxu0 0
        %828 = vmatmul.mubr.bf16.gmra.mrb[0].mxu0 %v624
        %v829 = vpop.f32.mrb[0].mxu0
        %v830 = vadd.f32 %v649, %v829
        %v831 = vpop.f32.mrb[0].mxu0
        %v832 = vpop.f32.mrb[0].mxu0
        %v833 = vadd.f32 %v649, %v832
        %v834 = vpop.f32.mrb[0].mxu0
        %835 = vmatprep.mubr.bf16.mxu0 0
        %836 = vmatmul.mubr.bf16.gmra.mrb[0].mxu0 %v625
        %v837 = vpop.f32.mrb[0].mxu0
        %v838 = vadd.f32 %v649, %v837
        %v839 = vpop.f32.mrb[0].mxu0
        %v840 = vpop.f32.mrb[0].mxu0
        %v841 = vadd.f32 %v649, %v840
        %v842 = vpop.f32.mrb[0].mxu0
        %843 = vmatprep.mubr.bf16.mxu0 0
        %844 = vmatmul.mubr.bf16.gmra.mrb[0].mxu0 %v626
        %v845 = vpop.f32.mrb[0].mxu0
        %v846 = vadd.f32 %v649, %v845
        %v847 = vpop.f32.mrb[0].mxu0
        %v848 = vpop.f32.mrb[0].mxu0
        %v849 = vadd.f32 %v649, %v848
        %v850 = vpop.f32.mrb[0].mxu0
        %851 = vmatprep.mubr.bf16.mxu0 0
        %852 = vmatmul.mubr.bf16.gmra.mrb[0].mxu0 %v627
        %v853 = vpop.f32.mrb[0].mxu0
        %v854 = vadd.f32 %v649, %v853
        %v855 = vpop.f32.mrb[0].mxu0
        %v856 = vpop.f32.mrb[0].mxu0
        %v857 = vadd.f32 %v649, %v856
        %v858 = vpop.f32.mrb[0].mxu0
        %859 = vdwg.mxu0
        %v860 = vmax.f32 %v734, 0.0
        %v861 = vmax.f32 %v737, 0.0
        %v862 = vmax.f32 %v742, 0.0
        %v863 = vmax.f32 %v745, 0.0
        %v864 = vmax.f32 %v750, 0.0
        %v865 = vmax.f32 %v753, 0.0
        %v866 = vmax.f32 %v758, 0.0
        %v867 = vmax.f32 %v761, 0.0
        %v868 = vmax.f32 %v766, 0.0
        %v869 = vmax.f32 %v769, 0.0
        %v870 = vmax.f32 %v774, 0.0
        %v871 = vmax.f32 %v777, 0.0
        %v872 = vmax.f32 %v782, 0.0
        %v873 = vmax.f32 %v785, 0.0
        %v874 = vmax.f32 %v790, 0.0
        %v875 = vmax.f32 %v793, 0.0
        %v876 = vmax.f32 %v798, 0.0
        %v877 = vmax.f32 %v801, 0.0
        %v878 = vmax.f32 %v806, 0.0
        %v879 = vmax.f32 %v809, 0.0
        %v880 = vmax.f32 %v814, 0.0
        %v881 = vmax.f32 %v817, 0.0
        %v882 = vmax.f32 %v822, 0.0
        %v883 = vmax.f32 %v825, 0.0
        %v884 = vmax.f32 %v830, 0.0
        %v885 = vmax.f32 %v833, 0.0
        %v886 = vmax.f32 %v838, 0.0
        %v887 = vmax.f32 %v841, 0.0
        %v888 = vmax.f32 %v846, 0.0
        %v889 = vmax.f32 %v849, 0.0
        %v890 = vmax.f32 %v854, 0.0
        %v891 = vmax.f32 %v857, 0.0
        %v892 = vpack.c.bf16 %v861, %v860
        %v893 = vpack.c.bf16 %v863, %v862
        %v894 = vpack.c.bf16 %v865, %v864
        %v895 = vpack.c.bf16 %v867, %v866
        %v896 = vpack.c.bf16 %v869, %v868
        %v897 = vpack.c.bf16 %v871, %v870
        %v898 = vpack.c.bf16 %v873, %v872
        %v899 = vpack.c.bf16 %v875, %v874
        %v900 = vpack.c.bf16 %v877, %v876
        %v901 = vpack.c.bf16 %v879, %v878
        %v902 = vpack.c.bf16 %v881, %v880
        %v903 = vpack.c.bf16 %v883, %v882
        %v904 = vpack.c.bf16 %v885, %v884
        %v905 = vpack.c.bf16 %v887, %v886
        %v906 = vpack.c.bf16 %v889, %v888
        %v907 = vpack.c.bf16 %v891, %v890
        %v924 = vunpack.c.l.b16 %v892
        %v925 = vunpack.c.h.b16 %v892
        %v926 = vunpack.c.l.b16 %v893
        %v927 = vunpack.c.h.b16 %v893
        %v928 = vunpack.c.l.b16 %v894
        %v929 = vunpack.c.h.b16 %v894
        %v930 = vunpack.c.l.b16 %v895
        %v931 = vunpack.c.h.b16 %v895
        %v932 = vunpack.c.l.b16 %v896
        %v933 = vunpack.c.h.b16 %v896
        %v934 = vunpack.c.l.b16 %v897
        %v935 = vunpack.c.h.b16 %v897
        %v936 = vunpack.c.l.b16 %v898
        %v937 = vunpack.c.h.b16 %v898
        %v938 = vunpack.c.l.b16 %v899
        %v939 = vunpack.c.h.b16 %v899
        %v940 = vunpack.c.l.b16 %v900
        %v941 = vunpack.c.h.b16 %v900
        %v942 = vunpack.c.l.b16 %v901
        %v943 = vunpack.c.h.b16 %v901
        %v944 = vunpack.c.l.b16 %v902
        %v945 = vunpack.c.h.b16 %v902
        %v946 = vunpack.c.l.b16 %v903
        %v947 = vunpack.c.h.b16 %v903
        %v948 = vunpack.c.l.b16 %v904
        %v949 = vunpack.c.h.b16 %v904
        %v950 = vunpack.c.l.b16 %v905
        %v951 = vunpack.c.h.b16 %v905
        %v952 = vunpack.c.l.b16 %v906
        %v953 = vunpack.c.h.b16 %v906
        %v954 = vunpack.c.l.b16 %v907
        %v955 = vunpack.c.h.b16 %v907
        %v956 = vpack.c.b16 %v924, %v924
        %v957 = vpack.c.b16 %v925, %v925
        %v958 = vpack.c.b16 %v926, %v926
        %v959 = vpack.c.b16 %v927, %v927
        %v960 = vpack.c.b16 %v928, %v928
        %v961 = vpack.c.b16 %v929, %v929
        %v962 = vpack.c.b16 %v930, %v930
        %v963 = vpack.c.b16 %v931, %v931
        %v964 = vpack.c.b16 %v932, %v932
        %v965 = vpack.c.b16 %v933, %v933
        %v966 = vpack.c.b16 %v934, %v934
        %v967 = vpack.c.b16 %v935, %v935
        %v968 = vpack.c.b16 %v936, %v936
        %v969 = vpack.c.b16 %v937, %v937
        %v970 = vpack.c.b16 %v938, %v938
        %v971 = vpack.c.b16 %v939, %v939
        %v972 = vpack.c.b16 %v940, %v940
        %v973 = vpack.c.b16 %v941, %v941
        %v974 = vpack.c.b16 %v942, %v942
        %v975 = vpack.c.b16 %v943, %v943
        %v976 = vpack.c.b16 %v944, %v944
        %v977 = vpack.c.b16 %v945, %v945
        %v978 = vpack.c.b16 %v946, %v946
        %v979 = vpack.c.b16 %v947, %v947
        %v980 = vpack.c.b16 %v948, %v948
        %v981 = vpack.c.b16 %v949, %v949
        %v982 = vpack.c.b16 %v950, %v950
        %v983 = vpack.c.b16 %v951, %v951
        %v984 = vpack.c.b16 %v952, %v952
        %v985 = vpack.c.b16 %v953, %v953
        %v986 = vpack.c.b16 %v954, %v954
        %v987 = vpack.c.b16 %v955, %v955
        %1020 = vst [vmem:[%s218] sm:$0xf] %v956
        %1021 = vst [vmem:[%s218 + $0x4] sm:$0xf] %v957
        %1022 = vst [vmem:[%s218 + $0x8] sm:$0xf] %v958
        %1023 = vst [vmem:[%s218 + $0xc] sm:$0xf] %v959
        %1024 = vst [vmem:[%s218 + $0x10] sm:$0xf] %v960
        %1025 = vst [vmem:[%s218 + $0x14] sm:$0xf] %v961
        %1026 = vst [vmem:[%s218 + $0x18] sm:$0xf] %v962
        %1027 = vst [vmem:[%s218 + $0x1c] sm:$0xf] %v963
        %1028 = vst [vmem:[%s218 + $0x20] sm:$0xf] %v964
        %1029 = vst [vmem:[%s218 + $0x24] sm:$0xf] %v965
        %1030 = vst [vmem:[%s218 + $0x28] sm:$0xf] %v966
        %1031 = vst [vmem:[%s218 + $0x2c] sm:$0xf] %v967
        %1032 = vst [vmem:[%s218 + $0x30] sm:$0xf] %v968
        %1033 = vst [vmem:[%s218 + $0x34] sm:$0xf] %v969
        %1034 = vst [vmem:[%s218 + $0x38] sm:$0xf] %v970
        %1035 = vst [vmem:[%s218 + $0x3c] sm:$0xf] %v971
        %1036 = vst [vmem:[%s218 + $0x40] sm:$0xf] %v972
        %1037 = vst [vmem:[%s218 + $0x44] sm:$0xf] %v973
        %1038 = vst [vmem:[%s218 + $0x48] sm:$0xf] %v974
        %1039 = vst [vmem:[%s218 + $0x4c] sm:$0xf] %v975
        %1040 = vst [vmem:[%s218 + $0x50] sm:$0xf] %v976
        %1041 = vst [vmem:[%s218 + $0x54] sm:$0xf] %v977
        %1042 = vst [vmem:[%s218 + $0x58] sm:$0xf] %v978
        %1043 = vst [vmem:[%s218 + $0x5c] sm:$0xf] %v979
        %1044 = vst [vmem:[%s218 + $0x60] sm:$0xf] %v980
        %1045 = vst [vmem:[%s218 + $0x64] sm:$0xf] %v981
        %1046 = vst [vmem:[%s218 + $0x68] sm:$0xf] %v982
        %1047 = vst [vmem:[%s218 + $0x6c] sm:$0xf] %v983
        %1048 = vst [vmem:[%s218 + $0x70] sm:$0xf] %v984
        %1049 = vst [vmem:[%s218 + $0x74] sm:$0xf] %v985
        %1050 = vst [vmem:[%s218 + $0x78] sm:$0xf] %v986
        %1051 = vst [vmem:[%s218 + $0x7c] sm:$0xf] %v987
        %s1052 = sand.u32 %s137, 1
        %s1053 = scalar_lea.sflag [#allocation3], %s1052
        %s1054 = sand.u32 %s137, 1
        %s1055 = smul.addr %s1054, 128
        %s1056 = scalar_lea.vmem [#allocation2], %s1055
        // Predicated region
        $region41: #{tpu_custom_call.1} parent=39 // pred_check
          %p1057 = pneg %p147
        $region42: #{tpu_custom_call.1} parent=39 // pred_check_branch
          %1059 = sbr.rel (%p1057) target = $region44
        $region43: #{tpu_custom_call.1} parent=39 // pred_region
          %s1060 = smul.u32 32, %s19
          %s1062 = ssub.s32 2048, 2048
          %1063 = vsyncadd %s1053, %s1062
          %s1064 = smul.addr %s1060, 64
          %s1065 = scalar_lea.hbm %s5, %s1064
          %s1066 = sshll.u32 %s1056, 4
          %s1067 = int_to_ptr.vmem [resolvable:$true] %s1066
          %1072 = dma.vmem_to_hbm [thread:$0]  %s1067, 2048, %s1065, %s1053, 64, 64, 4
        $region44: #{tpu_custom_call.1} parent=39 // pred_fallthru
          _
      $region40: #{tpu_custom_call.1} parent=5 // pred_fallthru
        _
      %p1073 = scmp.le.s32.totalorder 2, %s14
      // Predicated region
      $region45: #{tpu_custom_call.1} parent=5 // pred_check
        %p1074 = pneg %p1073
      $region46: #{tpu_custom_call.1} parent=5 // pred_check_branch
        %1076 = sbr.rel (%p1074) target = $region48
      $region47: #{tpu_custom_call.1} parent=5 // pred_region
        %s1077 = ssub.s32 %s14, 2
        // Predicated region
        $region49: #{tpu_custom_call.1} parent=47 // pred_check
          %p1078 = pneg %p153
        $region50: #{tpu_custom_call.1} parent=47 // pred_check_branch
          %1080 = sbr.rel (%p1078) target = $region52
        $region51: #{tpu_custom_call.1} parent=47 // pred_region
          %s1081 = sand.u32 %s138, 1
          %s1082 = scalar_lea.sflag [#allocation3], %s1081
          %s1083 = sand.u32 %s138, 1
          %s1084 = smul.addr %s1083, 128
          %s1085 = scalar_lea.vmem [#allocation2], %s1084
          %1086 = dma.done %s1082, 2048
        $region52: #{tpu_custom_call.1} parent=47 // pred_fallthru
          _
      $region48: #{tpu_custom_call.1} parent=5 // pred_fallthru
        _
    $region6: #{tpu_custom_call.1} parent=1 // loop_footer
      %s18 = sadd.s32 1, %s14
    $region7: #{tpu_custom_call.1} parent=1 // loop_footer_branch
      %13 = sbr.rel target = $region3
    $region8: #{tpu_custom_call.1} parent=1 // loop_exit
      _
    %1087 = vsyncpa [#allocation3], 1
    %s1088 = scalar_lea.sflag [#allocation3], 1
    %1089 = vsyncpa %s1088, 1

</llo_original>
